<compile_context>
chip_gen: v6e
topology: v6e:2x2x1
jax: 0.10.0
libtpu: 0.0.40
codegen_flags: <defaults>
</compile_context>

<pallas_src>
import jax
import jax.numpy as jnp
from jax.experimental import pallas as pl
from jax.experimental.pallas import tpu as pltpu

X_DIM = 4
Y_DIM = 1
R_DIM = 64
Z_DIM = 64
HID = 128
N_CTX = 8
N_TGT = 8

LANE = 128                              # lane width of the packed slabs
DATA_W = max(X_DIM + Y_DIM, Z_DIM)      # width of the per-call data slab

# ---- f32 "small" slab row layout -------------------------------------------
_EW1 = 0                                # rows 0..4 : encoder layer-1 rows (x0..x3, y)
_DW1X = _EW1 + X_DIM + Y_DIM            # rows 5..8 : decoder layer-1 x rows
_EB1 = _DW1X + X_DIM                    # 9
_EB2 = _EB1 + 1                         # 10
_EB3 = _EB2 + 1                         # 11 (cols >= R_DIM zero)
_LB = _EB3 + 1                          # 12 [l_bmu | l_bls]
_DB1 = _LB + 1                          # 13
_DB2 = _DB1 + 1                         # 14
_DB3 = _DB2 + 1                         # 15 (cols >= 2*Y_DIM zero)
SMALL_ROWS = _DB3 + 1                   # 16

# ---- bf16 weight-slab block indices ----------------------------------------
_W_EW2, _W_EW3, _W_LAT, _W_DW1Z, _W_DW2, _W_DW3 = range(6)

_VMEM = pl.BlockSpec(memory_space=pltpu.MemorySpace.VMEM)


# -----------------------------------------------------------------------------
# Fused kernel. z / r never leave VMEM; only one lane-dense stats tensor is
# written back.
# -----------------------------------------------------------------------------
def _np_forward_kernel(data_ref, small_ref, w_ref, out_ref):
    f32, bf16 = jnp.float32, jnp.bfloat16

    data = data_ref[...]                                  # [N_CTX+N_TGT+1, DATA_W] f32
    small = small_ref[...]                                # [SMALL_ROWS, LANE]      f32

    # ---- Encoder layer 1: cat([x, y]) @ W1 as K=5 VPU broadcast FMAs
    h = small[_EB1:_EB1 + 1, :]                           # bias [1, LANE]
    for k in range(X_DIM + Y_DIM):
        h = h + data[:N_CTX, k:k + 1] * small[_EW1 + k:_EW1 + k + 1, :]
    h = jnp.maximum(h, 0.0)                               # [N_CTX, LANE]

    # ---- Encoder layer 2 (MXU: bf16 x bf16 -> f32)
    h = jnp.dot(h.astype(bf16), w_ref[_W_EW2], preferred_element_type=f32)
    h = jnp.maximum(h + small[_EB2:_EB2 + 1, :], 0.0)

    # ---- aggregate_mean hoisted above layer 3 (linearity)
    hbar = jnp.mean(h, axis=0, keepdims=True)             # [1, LANE]
    r = (jnp.dot(hbar.astype(bf16), w_ref[_W_EW3], preferred_element_type=f32)
         + small[_EB3:_EB3 + 1, :])                       # [1, LANE], cols >= R_DIM are 0

    # ---- LatentSampler: fused (mu | log_sigma) head, reparameterization trick
    h_lat = (jnp.dot(r.astype(bf16), w_ref[_W_LAT], preferred_element_type=f32)
             + small[_LB:_LB + 1, :])                     # [1, 2*Z_DIM]
    mu_z = h_lat[:, :Z_DIM]
    sigma_z = 1e-4 + jax.nn.softplus(h_lat[:, Z_DIM:])
    eps = data[N_CTX + N_TGT:, :Z_DIM]                    # [1, Z_DIM]
    z = mu_z + sigma_z * eps                              # [1, Z_DIM], stays in VMEM

    # ---- Decoder layer 1: x-part as VPU FMAs, z-part on the MXU
    hz = jnp.dot(z.astype(bf16), w_ref[_W_DW1Z][:Z_DIM, :],
                 preferred_element_type=f32)              # [1, LANE]
    h = hz + small[_DB1:_DB1 + 1, :]
    for k in range(X_DIM):
        h = h + data[N_CTX:N_CTX + N_TGT, k:k + 1] * small[_DW1X + k:_DW1X + k + 1, :]
    h = jnp.maximum(h, 0.0)                               # [N_TGT, LANE]

    # ---- Decoder layers 2 & 3
    h = jnp.dot(h.astype(bf16), w_ref[_W_DW2], preferred_element_type=f32)
    h = jnp.maximum(h + small[_DB2:_DB2 + 1, :], 0.0)
    stats = (jnp.dot(h.astype(bf16), w_ref[_W_DW3], preferred_element_type=f32)
             + small[_DB3:_DB3 + 1, :])                   # [N_TGT, LANE] (cols>=2 padded)

    # chunk(2, -1): column select (mu | 1e-4 + softplus(log_sigma)); padded
    # columns are discarded in the wrapper.
    col = jax.lax.broadcasted_iota(jnp.int32, stats.shape, 1)
    y_rows = jnp.where(col < Y_DIM, stats, 1e-4 + jax.nn.softplus(stats))

    col_z = jax.lax.broadcasted_iota(jnp.int32, h_lat.shape, 1)
    z_row = jnp.where(col_z < Z_DIM, h_lat, 1e-4 + jax.nn.softplus(h_lat))

    out_ref[:N_TGT, :] = y_rows                           # lane-dense stores
    out_ref[N_TGT:, :] = z_row


# -----------------------------------------------------------------------------
# Parameter init (PyTorch nn.Linear default: U(-1/sqrt(fan_in), 1/sqrt(fan_in)))
# packed ONCE into the two slabs consumed by the kernel.
# -----------------------------------------------------------------------------
def init_params(key):
    ks = iter(jax.random.split(key, 16))

    def linear(fan_in, fan_out):
        bound = float(fan_in) ** -0.5
        w = jax.random.uniform(next(ks), (fan_in, fan_out), jnp.float32, -bound, bound)
        b = jax.random.uniform(next(ks), (fan_out,), jnp.float32, -bound, bound)
        return w, b

    e_w1, e_b1 = linear(X_DIM + Y_DIM, HID)
    e_w2, e_b2 = linear(HID, HID)
    e_w3, e_b3 = linear(HID, R_DIM)
    l_wmu, l_bmu = linear(R_DIM, Z_DIM)
    l_wls, l_bls = linear(R_DIM, Z_DIM)
    d_w1, d_b1 = linear(X_DIM + Z_DIM, HID)
    d_w2, d_b2 = linear(HID, HID)
    d_w3, d_b3 = linear(HID, 2 * Y_DIM)

    small = jnp.zeros((SMALL_ROWS, LANE), jnp.float32)
    small = small.at[_EW1:_EW1 + X_DIM + Y_DIM, :HID].set(e_w1)
    small = small.at[_DW1X:_DW1X + X_DIM, :HID].set(d_w1[:X_DIM])
    small = small.at[_EB1, :HID].set(e_b1)
    small = small.at[_EB2, :HID].set(e_b2)
    small = small.at[_EB3, :R_DIM].set(e_b3)
    small = small.at[_LB, :Z_DIM].set(l_bmu)
    small = small.at[_LB, Z_DIM:2 * Z_DIM].set(l_bls)
    small = small.at[_DB1, :HID].set(d_b1)
    small = small.at[_DB2, :HID].set(d_b2)
    small = small.at[_DB3, :2 * Y_DIM].set(d_b3)

    w = jnp.zeros((6, HID, LANE), jnp.float32)
    w = w.at[_W_EW2].set(e_w2)
    w = w.at[_W_EW3, :, :R_DIM].set(e_w3)
    w = w.at[_W_LAT, :R_DIM, :Z_DIM].set(l_wmu)
    w = w.at[_W_LAT, :R_DIM, Z_DIM:2 * Z_DIM].set(l_wls)
    w = w.at[_W_DW1Z, :Z_DIM, :HID].set(d_w1[X_DIM:])
    w = w.at[_W_DW2].set(d_w2)
    w = w.at[_W_DW3, :, :2 * Y_DIM].set(d_w3)

    return {"small": small, "w": w.astype(jnp.bfloat16)}


# -----------------------------------------------------------------------------
# Jitted wrapper: pack per-call tensors into one slab, one fused pallas_call,
# split the stats back to the NP.forward signature.
# -----------------------------------------------------------------------------
@jax.jit
def neural_process_forward(params, x_ctx, y_ctx, x_tgt, eps):
    ctx = jnp.concatenate([x_ctx, y_ctx], axis=-1)                       # (N_CTX, 5)
    ctx = jnp.pad(ctx, ((0, 0), (0, DATA_W - (X_DIM + Y_DIM))))
    tgt = jnp.pad(x_tgt, ((0, 0), (0, DATA_W - X_DIM)))
    eps_row = jnp.pad(eps.reshape(1, Z_DIM), ((0, 0), (0, DATA_W - Z_DIM)))
    data = jnp.concatenate([ctx, tgt, eps_row], axis=0)                  # (17, 64)

    out = pl.pallas_call(
        _np_forward_kernel,
        out_shape=jax.ShapeDtypeStruct((N_TGT + 1, LANE), jnp.float32),
        in_specs=[_VMEM, _VMEM, _VMEM],
        out_specs=_VMEM,
    )(data, params["small"], params["w"])

    mu_y = out[:N_TGT, :Y_DIM]
    sigma_y = out[:N_TGT, Y_DIM:2 * Y_DIM]
    mu_z = out[N_TGT, :Z_DIM]
    sigma_z = out[N_TGT, Z_DIM:2 * Z_DIM]
    return mu_y, sigma_y, mu_z, sigma_z


# -----------------------------------------------------------------------------
# Pure-JAX f32 reference (same bf16-quantized weights, f32 everywhere else).
# -----------------------------------------------------------------------------
def _reference_forward(params, x_ctx, y_ctx, x_tgt, eps):
    small = params["small"]
    W = params["w"].astype(jnp.float32)

    e_w1 = small[_EW1:_EW1 + X_DIM + Y_DIM, :HID]
    d_w1x = small[_DW1X:_DW1X + X_DIM, :HID]
    e_b1, e_b2 = small[_EB1, :HID], small[_EB2, :HID]
    e_b3 = small[_EB3, :R_DIM]
    l_bmu, l_bls = small[_LB, :Z_DIM], small[_LB, Z_DIM:2 * Z_DIM]
    d_b1, d_b2 = small[_DB1, :HID], small[_DB2, :HID]
    d_b3 = small[_DB3, :2 * Y_DIM]
    e_w2 = W[_W_EW2]
    e_w3 = W[_W_EW3, :, :R_DIM]
    l_wmu = W[_W_LAT, :R_DIM, :Z_DIM]
    l_wls = W[_W_LAT, :R_DIM, Z_DIM:2 * Z_DIM]
    d_w1z = W[_W_DW1Z, :Z_DIM, :HID]
    d_w2 = W[_W_DW2]
    d_w3 = W[_W_DW3, :, :2 * Y_DIM]

    xy = jnp.concatenate([x_ctx, y_ctx], axis=-1)
    h = jax.nn.relu(xy @ e_w1 + e_b1)
    h = jax.nn.relu(h @ e_w2 + e_b2)
    r_i = h @ e_w3 + e_b3
    r = jnp.mean(r_i, axis=0, keepdims=True)            # aggregate_mean
    mu_z = r @ l_wmu + l_bmu
    sigma_z = 1e-4 + jax.nn.softplus(r @ l_wls + l_bls)
    z = mu_z + sigma_z * eps
    zb = jnp.broadcast_to(z, (x_tgt.shape[0], Z_DIM))
    h = jax.nn.relu(x_tgt @ d_w1x + zb @ d_w1z + d_b1)
    h = jax.nn.relu(h @ d_w2 + d_b2)
    stats = h @ d_w3 + d_b3
    mu_y = stats[:, :Y_DIM]
    sigma_y = 1e-4 + jax.nn.softplus(stats[:, Y_DIM:])
    return mu_y, sigma_y, mu_z[0], sigma_z[0]


if __name__ == "__main__":
    key = jax.random.PRNGKey(0)
    k_param, k_xc, k_yc, k_xt, k_eps = jax.random.split(key, 5)

    params = init_params(k_param)
    x_ctx = jax.random.normal(k_xc, (N_CTX, X_DIM), jnp.float32)
    y_ctx = jax.random.normal(k_yc, (N_CTX, Y_DIM), jnp.float32)
    x_tgt = jax.random.normal(k_xt, (N_TGT, X_DIM), jnp.float32)
    # deterministic reparameterization noise (stands in for torch.randn_like)
    eps = jax.random.normal(k_eps, (1, Z_DIM), jnp.float32)

    out = neural_process_forward(params, x_ctx, y_ctx, x_tgt, eps)
    out = jax.block_until_ready(out)
    mu_y, sigma_y, mu_z, sigma_z = out

    ref = _reference_forward(params, x_ctx, y_ctx, x_tgt, eps)
    for got, exp in zip(out, ref):
        assert got.shape == exp.shape, (got.shape, exp.shape)
        # bf16-at-the-MXU-boundary vs f32 reference -> loosened tolerance
        assert jnp.allclose(got, exp, atol=2e-2, rtol=2e-2), "mismatch vs reference"

    assert mu_y.shape == (N_TGT, Y_DIM) and sigma_y.shape == (N_TGT, Y_DIM)
    assert mu_z.shape == (Z_DIM,) and sigma_z.shape == (Z_DIM,)
    print("KERNEL_OK")
</pallas_src>

<mosaic_0001>
module attributes {stable_mosaic.version = 11 : i64} {
  func.func @_np_forward_kernel(%arg0: memref<17x64xf32, #tpu.memory_space<vmem>>, %arg1: memref<16x128xf32, #tpu.memory_space<vmem>>, %arg2: memref<6x128x128xbf16, #tpu.memory_space<vmem>>, %arg3: memref<9x128xf32, #tpu.memory_space<vmem>>) attributes {dimension_semantics = [], scalar_prefetch = 0 : i64, scratch_operands = 0 : i64, tpu.core_type = #tpu.core_type<tc>} {
    %c0 = arith.constant 0 : index
    %c0_0 = arith.constant 0 : index
    %0 = vector.load %arg0[%c0, %c0_0] : memref<17x64xf32, #tpu.memory_space<vmem>>, vector<17x64xf32>
    %c0_1 = arith.constant 0 : index
    %c0_2 = arith.constant 0 : index
    %1 = vector.load %arg1[%c0_1, %c0_2] : memref<16x128xf32, #tpu.memory_space<vmem>>, vector<16x128xf32>
    %2 = vector.extract_strided_slice %1 {offsets = [9, 0], sizes = [1, 128], strides = [1, 1]} : vector<16x128xf32> to vector<1x128xf32>
    %3 = vector.extract_strided_slice %0 {offsets = [0, 0], sizes = [8, 1], strides = [1, 1]} : vector<17x64xf32> to vector<8x1xf32>
    %4 = vector.extract_strided_slice %1 {offsets = [0, 0], sizes = [1, 128], strides = [1, 1]} : vector<16x128xf32> to vector<1x128xf32>
    %5 = vector.broadcast %3 : vector<8x1xf32> to vector<8x128xf32>
    %6 = vector.broadcast %4 : vector<1x128xf32> to vector<8x128xf32>
    %7 = arith.mulf %5, %6 : vector<8x128xf32>
    %8 = vector.broadcast %2 : vector<1x128xf32> to vector<8x128xf32>
    %9 = arith.addf %8, %7 : vector<8x128xf32>
    %10 = vector.extract_strided_slice %0 {offsets = [0, 1], sizes = [8, 1], strides = [1, 1]} : vector<17x64xf32> to vector<8x1xf32>
    %11 = vector.extract_strided_slice %1 {offsets = [1, 0], sizes = [1, 128], strides = [1, 1]} : vector<16x128xf32> to vector<1x128xf32>
    %12 = vector.broadcast %10 : vector<8x1xf32> to vector<8x128xf32>
    %13 = vector.broadcast %11 : vector<1x128xf32> to vector<8x128xf32>
    %14 = arith.mulf %12, %13 : vector<8x128xf32>
    %15 = arith.addf %9, %14 : vector<8x128xf32>
    %16 = vector.extract_strided_slice %0 {offsets = [0, 2], sizes = [8, 1], strides = [1, 1]} : vector<17x64xf32> to vector<8x1xf32>
    %17 = vector.extract_strided_slice %1 {offsets = [2, 0], sizes = [1, 128], strides = [1, 1]} : vector<16x128xf32> to vector<1x128xf32>
    %18 = vector.broadcast %16 : vector<8x1xf32> to vector<8x128xf32>
    %19 = vector.broadcast %17 : vector<1x128xf32> to vector<8x128xf32>
    %20 = arith.mulf %18, %19 : vector<8x128xf32>
    %21 = arith.addf %15, %20 : vector<8x128xf32>
    %22 = vector.extract_strided_slice %0 {offsets = [0, 3], sizes = [8, 1], strides = [1, 1]} : vector<17x64xf32> to vector<8x1xf32>
    %23 = vector.extract_strided_slice %1 {offsets = [3, 0], sizes = [1, 128], strides = [1, 1]} : vector<16x128xf32> to vector<1x128xf32>
    %24 = vector.broadcast %22 : vector<8x1xf32> to vector<8x128xf32>
    %25 = vector.broadcast %23 : vector<1x128xf32> to vector<8x128xf32>
    %26 = arith.mulf %24, %25 : vector<8x128xf32>
    %27 = arith.addf %21, %26 : vector<8x128xf32>
    %28 = vector.extract_strided_slice %0 {offsets = [0, 4], sizes = [8, 1], strides = [1, 1]} : vector<17x64xf32> to vector<8x1xf32>
    %29 = vector.extract_strided_slice %1 {offsets = [4, 0], sizes = [1, 128], strides = [1, 1]} : vector<16x128xf32> to vector<1x128xf32>
    %30 = vector.broadcast %28 : vector<8x1xf32> to vector<8x128xf32>
    %31 = vector.broadcast %29 : vector<1x128xf32> to vector<8x128xf32>
    %32 = arith.mulf %30, %31 : vector<8x128xf32>
    %33 = arith.addf %27, %32 : vector<8x128xf32>
    %cst = arith.constant 0.000000e+00 : f32
    %34 = vector.broadcast %cst : f32 to vector<8x128xf32>
    %35 = arith.maximumf %33, %34 : vector<8x128xf32>
    %36 = arith.truncf %35 : vector<8x128xf32> to vector<8x128xbf16>
    %c0_3 = arith.constant 0 : index
    %c0_4 = arith.constant 0 : index
    %c0_5 = arith.constant 0 : index
    %37 = vector.load %arg2[%c0_3, %c0_4, %c0_5] : memref<6x128x128xbf16, #tpu.memory_space<vmem>>, vector<1x128x128xbf16>
    %38 = vector.shape_cast %37 : vector<1x128x128xbf16> to vector<128x128xbf16>
    %cst_6 = arith.constant dense<0.000000e+00> : vector<8x128xf32>
    %39 = tpu.matmul %36, %38, %cst_6 {dimension_numbers = #tpu.dot_dimension_numbers<[1], [0], [0], [1], [0, 0, 1, 1], [], []>} : vector<8x128xbf16>, vector<128x128xbf16>, vector<8x128xf32> -> vector<8x128xf32>
    %40 = vector.extract_strided_slice %1 {offsets = [10, 0], sizes = [1, 128], strides = [1, 1]} : vector<16x128xf32> to vector<1x128xf32>
    %41 = vector.broadcast %40 : vector<1x128xf32> to vector<8x128xf32>
    %42 = arith.addf %39, %41 : vector<8x128xf32>
    %cst_7 = arith.constant 0.000000e+00 : f32
    %43 = vector.broadcast %cst_7 : f32 to vector<8x128xf32>
    %44 = arith.maximumf %42, %43 : vector<8x128xf32>
    %cst_8 = arith.constant dense<0.000000e+00> : vector<128xf32>
    %45 = vector.multi_reduction <add>, %44, %cst_8 [0] : vector<8x128xf32> to vector<128xf32>
    %46 = vector.shape_cast %45 : vector<128xf32> to vector<1x128xf32>
    %cst_9 = arith.constant 8.000000e+00 : f32
    %47 = vector.broadcast %cst_9 : f32 to vector<1x128xf32>
    %48 = arith.divf %46, %47 : vector<1x128xf32>
    %49 = arith.truncf %48 : vector<1x128xf32> to vector<1x128xbf16>
    %c1 = arith.constant 1 : index
    %c0_10 = arith.constant 0 : index
    %c0_11 = arith.constant 0 : index
    %50 = vector.load %arg2[%c1, %c0_10, %c0_11] : memref<6x128x128xbf16, #tpu.memory_space<vmem>>, vector<1x128x128xbf16>
    %51 = vector.shape_cast %50 : vector<1x128x128xbf16> to vector<128x128xbf16>
    %cst_12 = arith.constant dense<0.000000e+00> : vector<1x128xf32>
    %52 = tpu.matmul %49, %51, %cst_12 {dimension_numbers = #tpu.dot_dimension_numbers<[1], [0], [0], [1], [0, 0, 1, 1], [], []>} : vector<1x128xbf16>, vector<128x128xbf16>, vector<1x128xf32> -> vector<1x128xf32>
    %53 = vector.extract_strided_slice %1 {offsets = [11, 0], sizes = [1, 128], strides = [1, 1]} : vector<16x128xf32> to vector<1x128xf32>
    %54 = arith.addf %52, %53 : vector<1x128xf32>
    %55 = arith.truncf %54 : vector<1x128xf32> to vector<1x128xbf16>
    %c2 = arith.constant 2 : index
    %c0_13 = arith.constant 0 : index
    %c0_14 = arith.constant 0 : index
    %56 = vector.load %arg2[%c2, %c0_13, %c0_14] : memref<6x128x128xbf16, #tpu.memory_space<vmem>>, vector<1x128x128xbf16>
    %57 = vector.shape_cast %56 : vector<1x128x128xbf16> to vector<128x128xbf16>
    %cst_15 = arith.constant dense<0.000000e+00> : vector<1x128xf32>
    %58 = tpu.matmul %55, %57, %cst_15 {dimension_numbers = #tpu.dot_dimension_numbers<[1], [0], [0], [1], [0, 0, 1, 1], [], []>} : vector<1x128xbf16>, vector<128x128xbf16>, vector<1x128xf32> -> vector<1x128xf32>
    %59 = vector.extract_strided_slice %1 {offsets = [12, 0], sizes = [1, 128], strides = [1, 1]} : vector<16x128xf32> to vector<1x128xf32>
    %60 = arith.addf %58, %59 : vector<1x128xf32>
    %61 = vector.extract_strided_slice %60 {offsets = [0, 0], sizes = [1, 64], strides = [1, 1]} : vector<1x128xf32> to vector<1x64xf32>
    %62 = vector.extract_strided_slice %60 {offsets = [0, 64], sizes = [1, 64], strides = [1, 1]} : vector<1x128xf32> to vector<1x64xf32>
    %cst_16 = arith.constant 0.000000e+00 : f32
    %63 = vector.broadcast %cst_16 : f32 to vector<1x64xf32>
    %64 = arith.maximumf %62, %63 : vector<1x64xf32>
    %65 = vector.broadcast %cst_16 : f32 to vector<1x64xf32>
    %66 = arith.subf %62, %65 : vector<1x64xf32>
    %67 = arith.cmpf one, %66, %66 : vector<1x64xf32>
    %68 = vector.broadcast %cst_16 : f32 to vector<1x64xf32>
    %69 = arith.addf %62, %68 : vector<1x64xf32>
    %70 = math.absf %66 : vector<1x64xf32>
    %cst_17 = arith.constant 0.000000e+00 : f32
    %71 = vector.broadcast %cst_17 : f32 to vector<1x64xf32>
    %72 = arith.subf %71, %70 : vector<1x64xf32>
    %73 = math.exp %72 : vector<1x64xf32>
    %74 = math.log1p %73 : vector<1x64xf32>
    %75 = arith.addf %64, %74 : vector<1x64xf32>
    %76 = arith.select %67, %69, %75 : vector<1x64xi1>, vector<1x64xf32>
    %cst_18 = arith.constant 9.99999974E-5 : f32
    %77 = vector.broadcast %cst_18 : f32 to vector<1x64xf32>
    %78 = arith.addf %77, %76 : vector<1x64xf32>
    %79 = vector.extract_strided_slice %0 {offsets = [16, 0], sizes = [1, 64], strides = [1, 1]} : vector<17x64xf32> to vector<1x64xf32>
    %80 = arith.mulf %78, %79 : vector<1x64xf32>
    %81 = arith.addf %61, %80 : vector<1x64xf32>
    %82 = arith.truncf %81 : vector<1x64xf32> to vector<1x64xbf16>
    %c3 = arith.constant 3 : index
    %c0_19 = arith.constant 0 : index
    %c0_20 = arith.constant 0 : index
    %83 = vector.load %arg2[%c3, %c0_19, %c0_20] : memref<6x128x128xbf16, #tpu.memory_space<vmem>>, vector<1x128x128xbf16>
    %84 = vector.shape_cast %83 : vector<1x128x128xbf16> to vector<128x128xbf16>
    %85 = vector.extract_strided_slice %84 {offsets = [0, 0], sizes = [64, 128], strides = [1, 1]} : vector<128x128xbf16> to vector<64x128xbf16>
    %cst_21 = arith.constant dense<0.000000e+00> : vector<1x128xf32>
    %86 = tpu.matmul %82, %85, %cst_21 {dimension_numbers = #tpu.dot_dimension_numbers<[1], [0], [0], [1], [0, 0, 1, 1], [], []>} : vector<1x64xbf16>, vector<64x128xbf16>, vector<1x128xf32> -> vector<1x128xf32>
    %87 = vector.extract_strided_slice %1 {offsets = [13, 0], sizes = [1, 128], strides = [1, 1]} : vector<16x128xf32> to vector<1x128xf32>
    %88 = arith.addf %86, %87 : vector<1x128xf32>
    %89 = vector.extract_strided_slice %0 {offsets = [8, 0], sizes = [8, 1], strides = [1, 1]} : vector<17x64xf32> to vector<8x1xf32>
    %90 = vector.extract_strided_slice %1 {offsets = [5, 0], sizes = [1, 128], strides = [1, 1]} : vector<16x128xf32> to vector<1x128xf32>
    %91 = vector.broadcast %89 : vector<8x1xf32> to vector<8x128xf32>
    %92 = vector.broadcast %90 : vector<1x128xf32> to vector<8x128xf32>
    %93 = arith.mulf %91, %92 : vector<8x128xf32>
    %94 = vector.broadcast %88 : vector<1x128xf32> to vector<8x128xf32>
    %95 = arith.addf %94, %93 : vector<8x128xf32>
    %96 = vector.extract_strided_slice %0 {offsets = [8, 1], sizes = [8, 1], strides = [1, 1]} : vector<17x64xf32> to vector<8x1xf32>
    %97 = vector.extract_strided_slice %1 {offsets = [6, 0], sizes = [1, 128], strides = [1, 1]} : vector<16x128xf32> to vector<1x128xf32>
    %98 = vector.broadcast %96 : vector<8x1xf32> to vector<8x128xf32>
    %99 = vector.broadcast %97 : vector<1x128xf32> to vector<8x128xf32>
    %100 = arith.mulf %98, %99 : vector<8x128xf32>
    %101 = arith.addf %95, %100 : vector<8x128xf32>
    %102 = vector.extract_strided_slice %0 {offsets = [8, 2], sizes = [8, 1], strides = [1, 1]} : vector<17x64xf32> to vector<8x1xf32>
    %103 = vector.extract_strided_slice %1 {offsets = [7, 0], sizes = [1, 128], strides = [1, 1]} : vector<16x128xf32> to vector<1x128xf32>
    %104 = vector.broadcast %102 : vector<8x1xf32> to vector<8x128xf32>
    %105 = vector.broadcast %103 : vector<1x128xf32> to vector<8x128xf32>
    %106 = arith.mulf %104, %105 : vector<8x128xf32>
    %107 = arith.addf %101, %106 : vector<8x128xf32>
    %108 = vector.extract_strided_slice %0 {offsets = [8, 3], sizes = [8, 1], strides = [1, 1]} : vector<17x64xf32> to vector<8x1xf32>
    %109 = vector.extract_strided_slice %1 {offsets = [8, 0], sizes = [1, 128], strides = [1, 1]} : vector<16x128xf32> to vector<1x128xf32>
    %110 = vector.broadcast %108 : vector<8x1xf32> to vector<8x128xf32>
    %111 = vector.broadcast %109 : vector<1x128xf32> to vector<8x128xf32>
    %112 = arith.mulf %110, %111 : vector<8x128xf32>
    %113 = arith.addf %107, %112 : vector<8x128xf32>
    %cst_22 = arith.constant 0.000000e+00 : f32
    %114 = vector.broadcast %cst_22 : f32 to vector<8x128xf32>
    %115 = arith.maximumf %113, %114 : vector<8x128xf32>
    %116 = arith.truncf %115 : vector<8x128xf32> to vector<8x128xbf16>
    %c4 = arith.constant 4 : index
    %c0_23 = arith.constant 0 : index
    %c0_24 = arith.constant 0 : index
    %117 = vector.load %arg2[%c4, %c0_23, %c0_24] : memref<6x128x128xbf16, #tpu.memory_space<vmem>>, vector<1x128x128xbf16>
    %118 = vector.shape_cast %117 : vector<1x128x128xbf16> to vector<128x128xbf16>
    %cst_25 = arith.constant dense<0.000000e+00> : vector<8x128xf32>
    %119 = tpu.matmul %116, %118, %cst_25 {dimension_numbers = #tpu.dot_dimension_numbers<[1], [0], [0], [1], [0, 0, 1, 1], [], []>} : vector<8x128xbf16>, vector<128x128xbf16>, vector<8x128xf32> -> vector<8x128xf32>
    %120 = vector.extract_strided_slice %1 {offsets = [14, 0], sizes = [1, 128], strides = [1, 1]} : vector<16x128xf32> to vector<1x128xf32>
    %121 = vector.broadcast %120 : vector<1x128xf32> to vector<8x128xf32>
    %122 = arith.addf %119, %121 : vector<8x128xf32>
    %cst_26 = arith.constant 0.000000e+00 : f32
    %123 = vector.broadcast %cst_26 : f32 to vector<8x128xf32>
    %124 = arith.maximumf %122, %123 : vector<8x128xf32>
    %125 = arith.truncf %124 : vector<8x128xf32> to vector<8x128xbf16>
    %c5 = arith.constant 5 : index
    %c0_27 = arith.constant 0 : index
    %c0_28 = arith.constant 0 : index
    %126 = vector.load %arg2[%c5, %c0_27, %c0_28] : memref<6x128x128xbf16, #tpu.memory_space<vmem>>, vector<1x128x128xbf16>
    %127 = vector.shape_cast %126 : vector<1x128x128xbf16> to vector<128x128xbf16>
    %cst_29 = arith.constant dense<0.000000e+00> : vector<8x128xf32>
    %128 = tpu.matmul %125, %127, %cst_29 {dimension_numbers = #tpu.dot_dimension_numbers<[1], [0], [0], [1], [0, 0, 1, 1], [], []>} : vector<8x128xbf16>, vector<128x128xbf16>, vector<8x128xf32> -> vector<8x128xf32>
    %129 = vector.extract_strided_slice %1 {offsets = [15, 0], sizes = [1, 128], strides = [1, 1]} : vector<16x128xf32> to vector<1x128xf32>
    %130 = vector.broadcast %129 : vector<1x128xf32> to vector<8x128xf32>
    %131 = arith.addf %128, %130 : vector<8x128xf32>
    %132 = tpu.iota {dimensions = array<i32: 1>} : vector<8x128xi32>
    %c1_i32 = arith.constant 1 : i32
    %133 = vector.broadcast %c1_i32 : i32 to vector<8x128xi32>
    %134 = arith.cmpi slt, %132, %133 : vector<8x128xi32>
    %cst_30 = arith.constant 0.000000e+00 : f32
    %135 = vector.broadcast %cst_30 : f32 to vector<8x128xf32>
    %136 = arith.maximumf %131, %135 : vector<8x128xf32>
    %137 = vector.broadcast %cst_30 : f32 to vector<8x128xf32>
    %138 = arith.subf %131, %137 : vector<8x128xf32>
    %139 = arith.cmpf one, %138, %138 : vector<8x128xf32>
    %140 = vector.broadcast %cst_30 : f32 to vector<8x128xf32>
    %141 = arith.addf %131, %140 : vector<8x128xf32>
    %142 = math.absf %138 : vector<8x128xf32>
    %cst_31 = arith.constant 0.000000e+00 : f32
    %143 = vector.broadcast %cst_31 : f32 to vector<8x128xf32>
    %144 = arith.subf %143, %142 : vector<8x128xf32>
    %145 = math.exp %144 : vector<8x128xf32>
    %146 = math.log1p %145 : vector<8x128xf32>
    %147 = arith.addf %136, %146 : vector<8x128xf32>
    %148 = arith.select %139, %141, %147 : vector<8x128xi1>, vector<8x128xf32>
    %cst_32 = arith.constant 9.99999974E-5 : f32
    %149 = vector.broadcast %cst_32 : f32 to vector<8x128xf32>
    %150 = arith.addf %149, %148 : vector<8x128xf32>
    %151 = arith.select %134, %131, %150 : vector<8x128xi1>, vector<8x128xf32>
    %152 = tpu.iota {dimensions = array<i32: 1>} : vector<1x128xi32>
    %c64_i32 = arith.constant 64 : i32
    %153 = vector.broadcast %c64_i32 : i32 to vector<1x128xi32>
    %154 = arith.cmpi slt, %152, %153 : vector<1x128xi32>
    %cst_33 = arith.constant 0.000000e+00 : f32
    %155 = vector.broadcast %cst_33 : f32 to vector<1x128xf32>
    %156 = arith.maximumf %60, %155 : vector<1x128xf32>
    %157 = vector.broadcast %cst_33 : f32 to vector<1x128xf32>
    %158 = arith.subf %60, %157 : vector<1x128xf32>
    %159 = arith.cmpf one, %158, %158 : vector<1x128xf32>
    %160 = vector.broadcast %cst_33 : f32 to vector<1x128xf32>
    %161 = arith.addf %60, %160 : vector<1x128xf32>
    %162 = math.absf %158 : vector<1x128xf32>
    %cst_34 = arith.constant 0.000000e+00 : f32
    %163 = vector.broadcast %cst_34 : f32 to vector<1x128xf32>
    %164 = arith.subf %163, %162 : vector<1x128xf32>
    %165 = math.exp %164 : vector<1x128xf32>
    %166 = math.log1p %165 : vector<1x128xf32>
    %167 = arith.addf %156, %166 : vector<1x128xf32>
    %168 = arith.select %159, %161, %167 : vector<1x128xi1>, vector<1x128xf32>
    %cst_35 = arith.constant 9.99999974E-5 : f32
    %169 = vector.broadcast %cst_35 : f32 to vector<1x128xf32>
    %170 = arith.addf %169, %168 : vector<1x128xf32>
    %171 = arith.select %154, %60, %170 : vector<1x128xi1>, vector<1x128xf32>
    %c0_36 = arith.constant 0 : index
    %c0_37 = arith.constant 0 : index
    %172 = vector.load %arg3[%c0_36, %c0_37] : memref<9x128xf32, #tpu.memory_space<vmem>>, vector<8x128xf32>
    tpu.vector_store %arg3[%c0_36, %c0_37], %151 {strides = array<i32>} : memref<9x128xf32, #tpu.memory_space<vmem>>, vector<8x128xf32>,
    %c8 = arith.constant 8 : index
    %c0_38 = arith.constant 0 : index
    %173 = vector.load %arg3[%c8, %c0_38] : memref<9x128xf32, #tpu.memory_space<vmem>>, vector<1x128xf32>
    tpu.vector_store %arg3[%c8, %c0_38], %171 {strides = array<i32>} : memref<9x128xf32, #tpu.memory_space<vmem>>, vector<1x128xf32>,
    return
  }
}

</mosaic_0001>

<llo_original>
// kernel: neural_process_forward.1
$region0: #{neural_process_forward.1}
  #allocation0 [shape = 'u32[]', space=smem, size = 0x4, offset = 0x4, fixed_abs, tag = 'smem constant byte address 0x4 - core index']
  #allocation1 [shape = 'u32[144,128]{1,0:T(1,128)}', space=vmem, size = 0x12000, scoped, tag = 'internal scratch']
  %s0 = inlined_call_operand.vmem [shape: f32[17,64], index: 0, kind: input, shape index: {}]
  %s1 = inlined_call_operand.vmem [shape: f32[16,128], index: 1, kind: input, shape index: {}]
  %s2 = inlined_call_operand.hbm [shape: bf16[6,128,128], index: 2, kind: input, shape index: {}]
  %s3 = inlined_call_operand.vmem [shape: f32[9,128], index: 3, kind: output, shape index: {}]
  %s4 = sld [smem:[#allocation0]]
  $region26: #{neural_process_forward.1} parent=0
    _
  %s6 = ssub.s32 1, %s4
  %s7 = scalar_select 0, %s6, %s4
  $region1: #{neural_process_forward.1} parent=0
    #allocation2 [shape = 'u8[196608]{0}', space=vmem, size = 0x30000, scoped, tag = 'input window, operand 2, single buffered']
    #allocation3 [shape = 's32[1]{0}', space=sflag, size = 0x4, scoped, tag = 'scoped memory for neural_process_forward.1']
    %8 = vsyncpa [#allocation3], 0
    // Predicated region
    $region2: #{neural_process_forward.1} parent=1 // pred_check
      _
    $region3: #{neural_process_forward.1} parent=1 // pred_check_branch
      %10 = sbr.rel (0) target = $region5
    $region4: #{neural_process_forward.1} parent=1 // pred_region
      _
    $region5: #{neural_process_forward.1} parent=1 // pred_fallthru
      _
    // Predicated region
    $region6: #{neural_process_forward.1} parent=1 // pred_check
      _
    $region7: #{neural_process_forward.1} parent=1 // pred_check_branch
      %12 = sbr.rel (0) target = $region9
    $region8: #{neural_process_forward.1} parent=1 // pred_region
      _
    $region9: #{neural_process_forward.1} parent=1 // pred_fallthru
      _
    // Predicated region
    $region10: #{neural_process_forward.1} parent=1 // pred_check
      _
    $region11: #{neural_process_forward.1} parent=1 // pred_check_branch
      %14 = sbr.rel (0) target = $region13
    $region12: #{neural_process_forward.1} parent=1 // pred_region
      %s16 = ssub.s32 6144, 6144
      %17 = vsyncadd [#allocation3], %s16
      %s18 = sshll.u32 [#allocation2], 4
      %s19 = int_to_ptr.vmem [resolvable:$true] %s18
      %24 = dma.hbm_to_vmem [thread:$0]  %s2, 6144, %s19, [#allocation3], 64, 64, 4
    $region13: #{neural_process_forward.1} parent=1 // pred_fallthru
      _
    // Predicated region
    $region14: #{neural_process_forward.1} parent=1 // pred_check
      _
    $region15: #{neural_process_forward.1} parent=1 // pred_check_branch
      %26 = sbr.rel (0) target = $region17
    $region16: #{neural_process_forward.1} parent=1 // pred_region
      %27 = dma.done [#allocation3], 6144
    $region17: #{neural_process_forward.1} parent=1 // pred_fallthru
      _
    %v29 = vld [vmem:[%s0] sm:$0xff]
    %v30 = vld [vmem:[%s0 + $0x8] sm:$0xff]
    %v31 = vld [vmem:[%s0 + $0x10] sm:$0x1]
    %v32 = vld [vmem:[%s1] sm:$0xff]
    %v33 = vld [vmem:[%s1 + $0x8] sm:$0xff]
    %35 = vset.pattern.permute.xlu0 0
    %36 = vperm.xlu0 %35, %v29
    %v37 = vpop.permute.xlu0 %36
    %v39 = vlaneseq
    %v40 = vshrl.u32 %v39, 7
    %v41 = vsub.s32 0, %v40
    %v42 = vrot.slane %v32, %v41
    %v43 = vmul.f32 %v37, %v42
    %v44 = vlaneseq
    %v45 = vshrl.u32 %v44, 7
    %v46 = vsub.s32 1, %v45
    %v47 = vrot.slane %v33, %v46
    %v48 = vadd.f32 %v47, %v43
    %49 = vset.pattern.permute.xlu0 1
    %50 = vperm.xlu0 %49, %v29
    %v51 = vpop.permute.xlu0 %50
    %v53 = vlaneseq
    %v54 = vshrl.u32 %v53, 7
    %v55 = vsub.s32 1, %v54
    %v56 = vrot.slane %v32, %v55
    %v57 = vmul.f32 %v51, %v56
    %v58 = vadd.f32 %v48, %v57
    %59 = vset.pattern.permute.xlu0 2
    %60 = vperm.xlu0 %59, %v29
    %v61 = vpop.permute.xlu0 %60
    %v63 = vlaneseq
    %v64 = vshrl.u32 %v63, 7
    %v65 = vsub.s32 2, %v64
    %v66 = vrot.slane %v32, %v65
    %v67 = vmul.f32 %v61, %v66
    %v68 = vadd.f32 %v58, %v67
    %69 = vset.pattern.permute.xlu0 3
    %70 = vperm.xlu0 %69, %v29
    %v71 = vpop.permute.xlu0 %70
    %v73 = vlaneseq
    %v74 = vshrl.u32 %v73, 7
    %v75 = vsub.s32 3, %v74
    %v76 = vrot.slane %v32, %v75
    %v77 = vmul.f32 %v71, %v76
    %v78 = vadd.f32 %v68, %v77
    %79 = vset.pattern.permute.xlu0 4
    %80 = vperm.xlu0 %79, %v29
    %v81 = vpop.permute.xlu0 %80
    %v83 = vlaneseq
    %v84 = vshrl.u32 %v83, 7
    %v85 = vsub.s32 4, %v84
    %v86 = vrot.slane %v32, %v85
    %v87 = vmul.f32 %v81, %v86
    %v88 = vadd.f32 %v78, %v87
    %v89 = vmax.f32 %v88, 0.0
    %v90 = vpack.c.bf16 %v89, %v89
    %v91 = vld [vmem:[#allocation2] sm:$0xf]
    %v92 = vld [vmem:[#allocation2 + $0x4] sm:$0xf]
    %v93 = vld [vmem:[#allocation2 + $0x8] sm:$0xf]
    %v94 = vld [vmem:[#allocation2 + $0xc] sm:$0xf]
    %v95 = vld [vmem:[#allocation2 + $0x10] sm:$0xf]
    %v96 = vld [vmem:[#allocation2 + $0x14] sm:$0xf]
    %v97 = vld [vmem:[#allocation2 + $0x18] sm:$0xf]
    %v98 = vld [vmem:[#allocation2 + $0x1c] sm:$0xf]
    %v99 = vld [vmem:[#allocation2 + $0x20] sm:$0xf]
    %v100 = vld [vmem:[#allocation2 + $0x24] sm:$0xf]
    %v101 = vld [vmem:[#allocation2 + $0x28] sm:$0xf]
    %v102 = vld [vmem:[#allocation2 + $0x2c] sm:$0xf]
    %v103 = vld [vmem:[#allocation2 + $0x30] sm:$0xf]
    %v104 = vld [vmem:[#allocation2 + $0x34] sm:$0xf]
    %v105 = vld [vmem:[#allocation2 + $0x38] sm:$0xf]
    %v106 = vld [vmem:[#allocation2 + $0x3c] sm:$0xf]
    %v107 = vlaneseq
    %v108 = vshrl.u32 %v107, 7
    %v109 = vsub.s32 2, %v108
    %v110 = vrot.slane %v33, %v109
    %v127 = vunpack.c.l.b16 %v91
    %v128 = vunpack.c.l.b16 %v92
    %v129 = vunpack.c.l.b16 %v93
    %v130 = vunpack.c.l.b16 %v94
    %v131 = vunpack.c.l.b16 %v95
    %v132 = vunpack.c.l.b16 %v96
    %v133 = vunpack.c.l.b16 %v97
    %v134 = vunpack.c.l.b16 %v98
    %v135 = vunpack.c.l.b16 %v99
    %v136 = vunpack.c.l.b16 %v100
    %v137 = vunpack.c.l.b16 %v101
    %v138 = vunpack.c.l.b16 %v102
    %v139 = vunpack.c.l.b16 %v103
    %v140 = vunpack.c.l.b16 %v104
    %v141 = vunpack.c.l.b16 %v105
    %v142 = vunpack.c.l.b16 %v106
    %v143 = vpack.c.b16 %v128, %v127
    %v144 = vpack.c.b16 %v130, %v129
    %v145 = vpack.c.b16 %v132, %v131
    %v146 = vpack.c.b16 %v134, %v133
    %v147 = vpack.c.b16 %v136, %v135
    %v148 = vpack.c.b16 %v138, %v137
    %v149 = vpack.c.b16 %v140, %v139
    %v150 = vpack.c.b16 %v142, %v141
    %159 = vmatprep.subr.bf16.mxu0 0
    %160 = vmatpush1.bf16.msra.mxu0 %v150
    %161 = vmatprep.subr.bf16.mxu0 0
    %162 = vmatpush1.bf16.msra.mxu0 %v149
    %163 = vmatprep.subr.bf16.mxu0 0
    %164 = vmatpush1.bf16.msra.mxu0 %v148
    %165 = vmatprep.subr.bf16.mxu0 0
    %166 = vmatpush1.bf16.msra.mxu0 %v147
    %167 = vmatprep.subr.bf16.mxu0 0
    %168 = vmatpush1.bf16.msra.mxu0 %v146
    %169 = vmatprep.subr.bf16.mxu0 0
    %170 = vmatpush1.bf16.msra.mxu0 %v145
    %171 = vmatprep.subr.bf16.mxu0 0
    %172 = vmatpush1.bf16.msra.mxu0 %v144
    %173 = vmatprep.subr.bf16.mxu0 0
    %174 = vmatpush1.bf16.msra.mxu0 %v143
    %175 = vmatprep.subr.bf16.mxu0 0
    %176 = vmatpush2.bf16.msra.mxu0 0
    %177 = vmatprep.subr.bf16.mxu0 0
    %178 = vmatpush2.bf16.msra.mxu0 0
    %179 = vmatprep.subr.bf16.mxu0 0
    %180 = vmatpush2.bf16.msra.mxu0 0
    %181 = vmatprep.subr.bf16.mxu0 0
    %182 = vmatpush2.bf16.msra.mxu0 0
    %183 = vmatprep.subr.bf16.mxu0 0
    %184 = vmatpush2.bf16.msra.mxu0 0
    %185 = vmatprep.subr.bf16.mxu0 0
    %186 = vmatpush2.bf16.msra.mxu0 0
    %187 = vmatprep.subr.bf16.mxu0 0
    %188 = vmatpush2.bf16.msra.mxu0 0
    %189 = vmatprep.subr.bf16.mxu0 0
    %190 = vmatpush2.bf16.msra.mxu0 0
    %191 = vmatprep.mubr.bf16.mxu0 0
    %192 = vmatmul.mubr.bf16.gmra.mxu0 %v90
    %v193 = vpop.f32.mrf.mxu0
    %v194 = vadd.f32 %v110, %v193
    %v195 = vpop.f32.mrf.mxu0
    %v196 = vpop.f32.mrf.mxu0
    %v197 = vpop.f32.mrf.mxu0
    %198 = vdwg.mxu0
    %v199 = vmax.f32 %v194, 0.0
    %v200 = vrot.slane %v199, 4
    %v201 = vadd.f32 %v199, %v200
    %v202 = vrot.slane %v201, 2
    %v203 = vadd.f32 %v201, %v202
    %v204 = vrot.slane %v203, 1
    %v205 = vadd.f32 %v203, %v204
    %v206 = vrcp.pop 8.0
    %v207 = vmul.f32 %v205, %v206
    %v208 = vpack.c.bf16 %v207, %v207
    %s209 = scalar_lea.vmem [#allocation2], 64
    %v210 = vld [vmem:[%s209] sm:$0xf]
    %v211 = vld [vmem:[%s209 + $0x4] sm:$0xf]
    %v212 = vld [vmem:[%s209 + $0x8] sm:$0xf]
    %v213 = vld [vmem:[%s209 + $0xc] sm:$0xf]
    %v214 = vld [vmem:[%s209 + $0x10] sm:$0xf]
    %v215 = vld [vmem:[%s209 + $0x14] sm:$0xf]
    %v216 = vld [vmem:[%s209 + $0x18] sm:$0xf]
    %v217 = vld [vmem:[%s209 + $0x1c] sm:$0xf]
    %v218 = vld [vmem:[%s209 + $0x20] sm:$0xf]
    %v219 = vld [vmem:[%s209 + $0x24] sm:$0xf]
    %v220 = vld [vmem:[%s209 + $0x28] sm:$0xf]
    %v221 = vld [vmem:[%s209 + $0x2c] sm:$0xf]
    %v222 = vld [vmem:[%s209 + $0x30] sm:$0xf]
    %v223 = vld [vmem:[%s209 + $0x34] sm:$0xf]
    %v224 = vld [vmem:[%s209 + $0x38] sm:$0xf]
    %v225 = vld [vmem:[%s209 + $0x3c] sm:$0xf]
    %v242 = vunpack.c.l.b16 %v210
    %v243 = vunpack.c.l.b16 %v211
    %v244 = vunpack.c.l.b16 %v212
    %v245 = vunpack.c.l.b16 %v213
    %v246 = vunpack.c.l.b16 %v214
    %v247 = vunpack.c.l.b16 %v215
    %v248 = vunpack.c.l.b16 %v216
    %v249 = vunpack.c.l.b16 %v217
    %v250 = vunpack.c.l.b16 %v218
    %v251 = vunpack.c.l.b16 %v219
    %v252 = vunpack.c.l.b16 %v220
    %v253 = vunpack.c.l.b16 %v221
    %v254 = vunpack.c.l.b16 %v222
    %v255 = vunpack.c.l.b16 %v223
    %v256 = vunpack.c.l.b16 %v224
    %v257 = vunpack.c.l.b16 %v225
    %v258 = vpack.c.b16 %v243, %v242
    %v259 = vpack.c.b16 %v245, %v244
    %v260 = vpack.c.b16 %v247, %v246
    %v261 = vpack.c.b16 %v249, %v248
    %v262 = vpack.c.b16 %v251, %v250
    %v263 = vpack.c.b16 %v253, %v252
    %v264 = vpack.c.b16 %v255, %v254
    %v265 = vpack.c.b16 %v257, %v256
    %v275 = vrot.slane %v33, 3
    %277 = vmatprep.subr.bf16.mxu0 0
    %278 = vmatpush1.bf16.msra.mxu0 %v265
    %279 = vmatprep.subr.bf16.mxu0 0
    %280 = vmatpush1.bf16.msra.mxu0 %v264
    %281 = vmatprep.subr.bf16.mxu0 0
    %282 = vmatpush1.bf16.msra.mxu0 %v263
    %283 = vmatprep.subr.bf16.mxu0 0
    %284 = vmatpush1.bf16.msra.mxu0 %v262
    %285 = vmatprep.subr.bf16.mxu0 0
    %286 = vmatpush1.bf16.msra.mxu0 %v261
    %287 = vmatprep.subr.bf16.mxu0 0
    %288 = vmatpush1.bf16.msra.mxu0 %v260
    %289 = vmatprep.subr.bf16.mxu0 0
    %290 = vmatpush1.bf16.msra.mxu0 %v259
    %291 = vmatprep.subr.bf16.mxu0 0
    %292 = vmatpush1.bf16.msra.mxu0 %v258
    %293 = vmatprep.subr.bf16.mxu0 0
    %294 = vmatpush2.bf16.msra.mxu0 0
    %295 = vmatprep.subr.bf16.mxu0 0
    %296 = vmatpush2.bf16.msra.mxu0 0
    %297 = vmatprep.subr.bf16.mxu0 0
    %298 = vmatpush2.bf16.msra.mxu0 0
    %299 = vmatprep.subr.bf16.mxu0 0
    %300 = vmatpush2.bf16.msra.mxu0 0
    %301 = vmatprep.subr.bf16.mxu0 0
    %302 = vmatpush2.bf16.msra.mxu0 0
    %303 = vmatprep.subr.bf16.mxu0 0
    %304 = vmatpush2.bf16.msra.mxu0 0
    %305 = vmatprep.subr.bf16.mxu0 0
    %306 = vmatpush2.bf16.msra.mxu0 0
    %307 = vmatprep.subr.bf16.mxu0 0
    %308 = vmatpush2.bf16.msra.mxu0 0
    %309 = vmatprep.mubr.bf16.mxu0 0
    %310 = vmatmul.mubr.bf16.gmra.mxu0 %v208
    %v311 = vpop.f32.mrf.mxu0
    %v312 = vadd.f32 %v275, %v311
    %v313 = vpop.f32.mrf.mxu0
    %v314 = vpop.f32.mrf.mxu0
    %v315 = vpop.f32.mrf.mxu0
    %316 = vdwg.mxu0
    %v317 = vpack.c.bf16 %v312, %v312
    %s318 = scalar_lea.vmem [#allocation2], 128
    %v319 = vld [vmem:[%s318] sm:$0xf]
    %v320 = vld [vmem:[%s318 + $0x4] sm:$0xf]
    %v321 = vld [vmem:[%s318 + $0x8] sm:$0xf]
    %v322 = vld [vmem:[%s318 + $0xc] sm:$0xf]
    %v323 = vld [vmem:[%s318 + $0x10] sm:$0xf]
    %v324 = vld [vmem:[%s318 + $0x14] sm:$0xf]
    %v325 = vld [vmem:[%s318 + $0x18] sm:$0xf]
    %v326 = vld [vmem:[%s318 + $0x1c] sm:$0xf]
    %v327 = vld [vmem:[%s318 + $0x20] sm:$0xf]
    %v328 = vld [vmem:[%s318 + $0x24] sm:$0xf]
    %v329 = vld [vmem:[%s318 + $0x28] sm:$0xf]
    %v330 = vld [vmem:[%s318 + $0x2c] sm:$0xf]
    %v331 = vld [vmem:[%s318 + $0x30] sm:$0xf]
    %v332 = vld [vmem:[%s318 + $0x34] sm:$0xf]
    %v333 = vld [vmem:[%s318 + $0x38] sm:$0xf]
    %v334 = vld [vmem:[%s318 + $0x3c] sm:$0xf]
    %v351 = vunpack.c.l.b16 %v319
    %v352 = vunpack.c.l.b16 %v320
    %v353 = vunpack.c.l.b16 %v321
    %v354 = vunpack.c.l.b16 %v322
    %v355 = vunpack.c.l.b16 %v323
    %v356 = vunpack.c.l.b16 %v324
    %v357 = vunpack.c.l.b16 %v325
    %v358 = vunpack.c.l.b16 %v326
    %v359 = vunpack.c.l.b16 %v327
    %v360 = vunpack.c.l.b16 %v328
    %v361 = vunpack.c.l.b16 %v329
    %v362 = vunpack.c.l.b16 %v330
    %v363 = vunpack.c.l.b16 %v331
    %v364 = vunpack.c.l.b16 %v332
    %v365 = vunpack.c.l.b16 %v333
    %v366 = vunpack.c.l.b16 %v334
    %v367 = vpack.c.b16 %v352, %v351
    %v368 = vpack.c.b16 %v354, %v353
    %v369 = vpack.c.b16 %v356, %v355
    %v370 = vpack.c.b16 %v358, %v357
    %v371 = vpack.c.b16 %v360, %v359
    %v372 = vpack.c.b16 %v362, %v361
    %v373 = vpack.c.b16 %v364, %v363
    %v374 = vpack.c.b16 %v366, %v365
    %v383 = vrot.slane %v33, 4
    %385 = vmatprep.subr.bf16.mxu0 0
    %386 = vmatpush1.bf16.msra.mxu0 %v374
    %387 = vmatprep.subr.bf16.mxu0 0
    %388 = vmatpush1.bf16.msra.mxu0 %v373
    %389 = vmatprep.subr.bf16.mxu0 0
    %390 = vmatpush1.bf16.msra.mxu0 %v372
    %391 = vmatprep.subr.bf16.mxu0 0
    %392 = vmatpush1.bf16.msra.mxu0 %v371
    %393 = vmatprep.subr.bf16.mxu0 0
    %394 = vmatpush1.bf16.msra.mxu0 %v370
    %395 = vmatprep.subr.bf16.mxu0 0
    %396 = vmatpush1.bf16.msra.mxu0 %v369
    %397 = vmatprep.subr.bf16.mxu0 0
    %398 = vmatpush1.bf16.msra.mxu0 %v368
    %399 = vmatprep.subr.bf16.mxu0 0
    %400 = vmatpush1.bf16.msra.mxu0 %v367
    %401 = vmatprep.subr.bf16.mxu0 0
    %402 = vmatpush2.bf16.msra.mxu0 0
    %403 = vmatprep.subr.bf16.mxu0 0
    %404 = vmatpush2.bf16.msra.mxu0 0
    %405 = vmatprep.subr.bf16.mxu0 0
    %406 = vmatpush2.bf16.msra.mxu0 0
    %407 = vmatprep.subr.bf16.mxu0 0
    %408 = vmatpush2.bf16.msra.mxu0 0
    %409 = vmatprep.subr.bf16.mxu0 0
    %410 = vmatpush2.bf16.msra.mxu0 0
    %411 = vmatprep.subr.bf16.mxu0 0
    %412 = vmatpush2.bf16.msra.mxu0 0
    %413 = vmatprep.subr.bf16.mxu0 0
    %414 = vmatpush2.bf16.msra.mxu0 0
    %415 = vmatprep.subr.bf16.mxu0 0
    %416 = vmatpush2.bf16.msra.mxu0 0
    %417 = vmatprep.mubr.bf16.mxu0 0
    %418 = vmatmul.mubr.bf16.gmra.mxu0 %v317
    %v419 = vpop.f32.mrf.mxu0
    %v420 = vadd.f32 %v383, %v419
    %v421 = vpop.f32.mrf.mxu0
    %v422 = vpop.f32.mrf.mxu0
    %v423 = vpop.f32.mrf.mxu0
    %424 = vdwg.mxu0
    %v425 = vmax.f32 %v420, 0.0
    %vm426 = vcmp.ne.f32.partialorder %v420, %v420
    %v427 = vadd.f32 %v420, 0.0
    %v428 = vand.u32 2147483647, %v420
    %v429 = vsub.f32 0.0, %v428
    %v430 = vmul.f32 %v429, 1.442695
    %v431 = vpow.pop %v430
    %v432 = vadd.f32 %v431, 1.0
    %v433 = vlog2.pop %v432
    %v434 = vmul.f32 %v433, 0.6931472
    %v435 = vmul.f32 -0.5, %v431
    %v436 = vadd.f32 %v435, 1.0
    %v437 = vmul.f32 %v436, %v431
    %v438 = vand.u32 2147483647, %v431
    %vm439 = vcmp.lt.f32.partialorder %v438, 0.0004427343
    %v440 = vsel %vm439, %v437, %v434
    %v441 = vadd.f32 %v425, %v440
    %v442 = vsel %vm426, %v427, %v441
    %v443 = vadd.f32 %v442, 0.0001
    %445 = vrot.lane.b32.xlu0 %v31, 64
    %v446 = vpop.permute.xlu0 %445
    %v448 = vmul.f32 %v443, %v446
    %450 = vrot.lane.b32.xlu0 %v448, 64
    %v451 = vpop.permute.xlu0 %450
    %v453 = vadd.f32 %v420, %v451
    %v454 = vpack.c.bf16 %v453, %v453
    %s455 = scalar_lea.vmem [#allocation2], 192
    %v456 = vld [vmem:[%s455] sm:$0xf]
    %v457 = vld [vmem:[%s455 + $0x4] sm:$0xf]
    %v458 = vld [vmem:[%s455 + $0x8] sm:$0xf]
    %v459 = vld [vmem:[%s455 + $0xc] sm:$0xf]
    %v460 = vld [vmem:[%s455 + $0x10] sm:$0xf]
    %v461 = vld [vmem:[%s455 + $0x14] sm:$0xf]
    %v462 = vld [vmem:[%s455 + $0x18] sm:$0xf]
    %v463 = vld [vmem:[%s455 + $0x1c] sm:$0xf]
    %v472 = vunpack.c.l.b16 %v456
    %v473 = vunpack.c.l.b16 %v457
    %v474 = vunpack.c.l.b16 %v458
    %v475 = vunpack.c.l.b16 %v459
    %v476 = vunpack.c.l.b16 %v460
    %v477 = vunpack.c.l.b16 %v461
    %v478 = vunpack.c.l.b16 %v462
    %v479 = vunpack.c.l.b16 %v463
    %v480 = vpack.c.b16 %v473, %v472
    %v481 = vpack.c.b16 %v475, %v474
    %v482 = vpack.c.b16 %v477, %v476
    %v483 = vpack.c.b16 %v479, %v478
    %v488 = vrot.slane %v33, 5
    %vm490 = vcmask 523264
    %v492 = vsel %vm490, %v454, 0
    %494 = vmatprep.subr.bf16.mxu0 0
    %495 = vmatpush1.bf16.msra.mxu0 0
    %496 = vmatprep.subr.bf16.mxu0 0
    %497 = vmatpush1.bf16.msra.mxu0 0
    %498 = vmatprep.subr.bf16.mxu0 0
    %499 = vmatpush1.bf16.msra.mxu0 0
    %500 = vmatprep.subr.bf16.mxu0 0
    %501 = vmatpush1.bf16.msra.mxu0 0
    %502 = vmatprep.subr.bf16.mxu0 0
    %503 = vmatpush1.bf16.msra.mxu0 %v483
    %504 = vmatprep.subr.bf16.mxu0 0
    %505 = vmatpush1.bf16.msra.mxu0 %v482
    %506 = vmatprep.subr.bf16.mxu0 0
    %507 = vmatpush1.bf16.msra.mxu0 %v481
    %508 = vmatprep.subr.bf16.mxu0 0
    %509 = vmatpush1.bf16.msra.mxu0 %v480
    %510 = vmatprep.subr.bf16.mxu0 0
    %511 = vmatpush2.bf16.msra.mxu0 0
    %512 = vmatprep.subr.bf16.mxu0 0
    %513 = vmatpush2.bf16.msra.mxu0 0
    %514 = vmatprep.subr.bf16.mxu0 0
    %515 = vmatpush2.bf16.msra.mxu0 0
    %516 = vmatprep.subr.bf16.mxu0 0
    %517 = vmatpush2.bf16.msra.mxu0 0
    %518 = vmatprep.subr.bf16.mxu0 0
    %519 = vmatpush2.bf16.msra.mxu0 0
    %520 = vmatprep.subr.bf16.mxu0 0
    %521 = vmatpush2.bf16.msra.mxu0 0
    %522 = vmatprep.subr.bf16.mxu0 0
    %523 = vmatpush2.bf16.msra.mxu0 0
    %524 = vmatprep.subr.bf16.mxu0 0
    %525 = vmatpush2.bf16.msra.mxu0 0
    %526 = vmatprep.mubr.bf16.mxu0 0
    %527 = vmatmul.mubr.bf16.gmra.mxu0 %v492
    %v528 = vpop.f32.mrf.mxu0
    %v529 = vadd.f32 %v488, %v528
    %v530 = vpop.f32.mrf.mxu0
    %v531 = vpop.f32.mrf.mxu0
    %v532 = vpop.f32.mrf.mxu0
    %533 = vdwg.mxu0
    %535 = vset.pattern.permute.xlu0 0
    %536 = vperm.xlu0 %535, %v30
    %v537 = vpop.permute.xlu0 %536
    %v539 = vlaneseq
    %v540 = vshrl.u32 %v539, 7
    %v541 = vsub.s32 5, %v540
    %v542 = vrot.slane %v32, %v541
    %v543 = vmul.f32 %v537, %v542
    %v544 = vlaneseq
    %v545 = vshrl.u32 %v544, 7
    %v546 = vsub.s32 0, %v545
    %v547 = vrot.slane %v529, %v546
    %v548 = vadd.f32 %v547, %v543
    %549 = vset.pattern.permute.xlu0 1
    %550 = vperm.xlu0 %549, %v30
    %v551 = vpop.permute.xlu0 %550
    %v553 = vlaneseq
    %v554 = vshrl.u32 %v553, 7
    %v555 = vsub.s32 6, %v554
    %v556 = vrot.slane %v32, %v555
    %v557 = vmul.f32 %v551, %v556
    %v558 = vadd.f32 %v548, %v557
    %559 = vset.pattern.permute.xlu0 2
    %560 = vperm.xlu0 %559, %v30
    %v561 = vpop.permute.xlu0 %560
    %v563 = vlaneseq
    %v564 = vshrl.u32 %v563, 7
    %v565 = vsub.s32 7, %v564
    %v566 = vrot.slane %v32, %v565
    %v567 = vmul.f32 %v561, %v566
    %v568 = vadd.f32 %v558, %v567
    %569 = vset.pattern.permute.xlu0 3
    %570 = vperm.xlu0 %569, %v30
    %v571 = vpop.permute.xlu0 %570
    %v573 = vlaneseq
    %v574 = vshrl.u32 %v573, 7
    %v575 = vsub.s32 0, %v574
    %v576 = vrot.slane %v33, %v575
    %v577 = vmul.f32 %v571, %v576
    %v578 = vadd.f32 %v568, %v577
    %v579 = vmax.f32 %v578, 0.0
    %v580 = vpack.c.bf16 %v579, %v579
    %s581 = scalar_lea.vmem [#allocation2], 256
    %v582 = vld [vmem:[%s581] sm:$0xf]
    %v583 = vld [vmem:[%s581 + $0x4] sm:$0xf]
    %v584 = vld [vmem:[%s581 + $0x8] sm:$0xf]
    %v585 = vld [vmem:[%s581 + $0xc] sm:$0xf]
    %v586 = vld [vmem:[%s581 + $0x10] sm:$0xf]
    %v587 = vld [vmem:[%s581 + $0x14] sm:$0xf]
    %v588 = vld [vmem:[%s581 + $0x18] sm:$0xf]
    %v589 = vld [vmem:[%s581 + $0x1c] sm:$0xf]
    %v590 = vld [vmem:[%s581 + $0x20] sm:$0xf]
    %v591 = vld [vmem:[%s581 + $0x24] sm:$0xf]
    %v592 = vld [vmem:[%s581 + $0x28] sm:$0xf]
    %v593 = vld [vmem:[%s581 + $0x2c] sm:$0xf]
    %v594 = vld [vmem:[%s581 + $0x30] sm:$0xf]
    %v595 = vld [vmem:[%s581 + $0x34] sm:$0xf]
    %v596 = vld [vmem:[%s581 + $0x38] sm:$0xf]
    %v597 = vld [vmem:[%s581 + $0x3c] sm:$0xf]
    %v598 = vlaneseq
    %v599 = vshrl.u32 %v598, 7
    %v600 = vsub.s32 6, %v599
    %v601 = vrot.slane %v33, %v600
    %v618 = vunpack.c.l.b16 %v582
    %v619 = vunpack.c.l.b16 %v583
    %v620 = vunpack.c.l.b16 %v584
    %v621 = vunpack.c.l.b16 %v585
    %v622 = vunpack.c.l.b16 %v586
    %v623 = vunpack.c.l.b16 %v587
    %v624 = vunpack.c.l.b16 %v588
    %v625 = vunpack.c.l.b16 %v589
    %v626 = vunpack.c.l.b16 %v590
    %v627 = vunpack.c.l.b16 %v591
    %v628 = vunpack.c.l.b16 %v592
    %v629 = vunpack.c.l.b16 %v593
    %v630 = vunpack.c.l.b16 %v594
    %v631 = vunpack.c.l.b16 %v595
    %v632 = vunpack.c.l.b16 %v596
    %v633 = vunpack.c.l.b16 %v597
    %v634 = vpack.c.b16 %v619, %v618
    %v635 = vpack.c.b16 %v621, %v620
    %v636 = vpack.c.b16 %v623, %v622
    %v637 = vpack.c.b16 %v625, %v624
    %v638 = vpack.c.b16 %v627, %v626
    %v639 = vpack.c.b16 %v629, %v628
    %v640 = vpack.c.b16 %v631, %v630
    %v641 = vpack.c.b16 %v633, %v632
    %650 = vmatprep.subr.bf16.mxu0 0
    %651 = vmatpush1.bf16.msra.mxu0 %v641
    %652 = vmatprep.subr.bf16.mxu0 0
    %653 = vmatpush1.bf16.msra.mxu0 %v640
    %654 = vmatprep.subr.bf16.mxu0 0
    %655 = vmatpush1.bf16.msra.mxu0 %v639
    %656 = vmatprep.subr.bf16.mxu0 0
    %657 = vmatpush1.bf16.msra.mxu0 %v638
    %658 = vmatprep.subr.bf16.mxu0 0
    %659 = vmatpush1.bf16.msra.mxu0 %v637
    %660 = vmatprep.subr.bf16.mxu0 0
    %661 = vmatpush1.bf16.msra.mxu0 %v636
    %662 = vmatprep.subr.bf16.mxu0 0
    %663 = vmatpush1.bf16.msra.mxu0 %v635
    %664 = vmatprep.subr.bf16.mxu0 0
    %665 = vmatpush1.bf16.msra.mxu0 %v634
    %666 = vmatprep.subr.bf16.mxu0 0
    %667 = vmatpush2.bf16.msra.mxu0 0
    %668 = vmatprep.subr.bf16.mxu0 0
    %669 = vmatpush2.bf16.msra.mxu0 0
    %670 = vmatprep.subr.bf16.mxu0 0
    %671 = vmatpush2.bf16.msra.mxu0 0
    %672 = vmatprep.subr.bf16.mxu0 0
    %673 = vmatpush2.bf16.msra.mxu0 0
    %674 = vmatprep.subr.bf16.mxu0 0
    %675 = vmatpush2.bf16.msra.mxu0 0
    %676 = vmatprep.subr.bf16.mxu0 0
    %677 = vmatpush2.bf16.msra.mxu0 0
    %678 = vmatprep.subr.bf16.mxu0 0
    %679 = vmatpush2.bf16.msra.mxu0 0
    %680 = vmatprep.subr.bf16.mxu0 0
    %681 = vmatpush2.bf16.msra.mxu0 0
    %682 = vmatprep.mubr.bf16.mxu0 0
    %683 = vmatmul.mubr.bf16.gmra.mxu0 %v580
    %v684 = vpop.f32.mrf.mxu0
    %v685 = vadd.f32 %v601, %v684
    %v686 = vpop.f32.mrf.mxu0
    %v687 = vpop.f32.mrf.mxu0
    %v688 = vpop.f32.mrf.mxu0
    %689 = vdwg.mxu0
    %v690 = vmax.f32 %v685, 0.0
    %v691 = vpack.c.bf16 %v690, %v690
    %s692 = scalar_lea.vmem [#allocation2], 320
    %v693 = vld [vmem:[%s692] sm:$0xf]
    %v694 = vld [vmem:[%s692 + $0x4] sm:$0xf]
    %v695 = vld [vmem:[%s692 + $0x8] sm:$0xf]
    %v696 = vld [vmem:[%s692 + $0xc] sm:$0xf]
    %v697 = vld [vmem:[%s692 + $0x10] sm:$0xf]
    %v698 = vld [vmem:[%s692 + $0x14] sm:$0xf]
    %v699 = vld [vmem:[%s692 + $0x18] sm:$0xf]
    %v700 = vld [vmem:[%s692 + $0x1c] sm:$0xf]
    %v701 = vld [vmem:[%s692 + $0x20] sm:$0xf]
    %v702 = vld [vmem:[%s692 + $0x24] sm:$0xf]
    %v703 = vld [vmem:[%s692 + $0x28] sm:$0xf]
    %v704 = vld [vmem:[%s692 + $0x2c] sm:$0xf]
    %v705 = vld [vmem:[%s692 + $0x30] sm:$0xf]
    %v706 = vld [vmem:[%s692 + $0x34] sm:$0xf]
    %v707 = vld [vmem:[%s692 + $0x38] sm:$0xf]
    %v708 = vld [vmem:[%s692 + $0x3c] sm:$0xf]
    %v709 = vlaneseq
    %v710 = vshrl.u32 %v709, 7
    %v711 = vsub.s32 7, %v710
    %v712 = vrot.slane %v33, %v711
    %v729 = vunpack.c.l.b16 %v693
    %v730 = vunpack.c.l.b16 %v694
    %v731 = vunpack.c.l.b16 %v695
    %v732 = vunpack.c.l.b16 %v696
    %v733 = vunpack.c.l.b16 %v697
    %v734 = vunpack.c.l.b16 %v698
    %v735 = vunpack.c.l.b16 %v699
    %v736 = vunpack.c.l.b16 %v700
    %v737 = vunpack.c.l.b16 %v701
    %v738 = vunpack.c.l.b16 %v702
    %v739 = vunpack.c.l.b16 %v703
    %v740 = vunpack.c.l.b16 %v704
    %v741 = vunpack.c.l.b16 %v705
    %v742 = vunpack.c.l.b16 %v706
    %v743 = vunpack.c.l.b16 %v707
    %v744 = vunpack.c.l.b16 %v708
    %v745 = vpack.c.b16 %v730, %v729
    %v746 = vpack.c.b16 %v732, %v731
    %v747 = vpack.c.b16 %v734, %v733
    %v748 = vpack.c.b16 %v736, %v735
    %v749 = vpack.c.b16 %v738, %v737
    %v750 = vpack.c.b16 %v740, %v739
    %v751 = vpack.c.b16 %v742, %v741
    %v752 = vpack.c.b16 %v744, %v743
    %761 = vmatprep.subr.bf16.mxu0 0
    %762 = vmatpush1.bf16.msra.mxu0 %v752
    %763 = vmatprep.subr.bf16.mxu0 0
    %764 = vmatpush1.bf16.msra.mxu0 %v751
    %765 = vmatprep.subr.bf16.mxu0 0
    %766 = vmatpush1.bf16.msra.mxu0 %v750
    %767 = vmatprep.subr.bf16.mxu0 0
    %768 = vmatpush1.bf16.msra.mxu0 %v749
    %769 = vmatprep.subr.bf16.mxu0 0
    %770 = vmatpush1.bf16.msra.mxu0 %v748
    %771 = vmatprep.subr.bf16.mxu0 0
    %772 = vmatpush1.bf16.msra.mxu0 %v747
    %773 = vmatprep.subr.bf16.mxu0 0
    %774 = vmatpush1.bf16.msra.mxu0 %v746
    %775 = vmatprep.subr.bf16.mxu0 0
    %776 = vmatpush1.bf16.msra.mxu0 %v745
    %777 = vmatprep.subr.bf16.mxu0 0
    %778 = vmatpush2.bf16.msra.mxu0 0
    %779 = vmatprep.subr.bf16.mxu0 0
    %780 = vmatpush2.bf16.msra.mxu0 0
    %781 = vmatprep.subr.bf16.mxu0 0
    %782 = vmatpush2.bf16.msra.mxu0 0
    %783 = vmatprep.subr.bf16.mxu0 0
    %784 = vmatpush2.bf16.msra.mxu0 0
    %785 = vmatprep.subr.bf16.mxu0 0
    %786 = vmatpush2.bf16.msra.mxu0 0
    %787 = vmatprep.subr.bf16.mxu0 0
    %788 = vmatpush2.bf16.msra.mxu0 0
    %789 = vmatprep.subr.bf16.mxu0 0
    %790 = vmatpush2.bf16.msra.mxu0 0
    %791 = vmatprep.subr.bf16.mxu0 0
    %792 = vmatpush2.bf16.msra.mxu0 0
    %793 = vmatprep.mubr.bf16.mxu0 0
    %794 = vmatmul.mubr.bf16.gmra.mxu0 %v691
    %v795 = vpop.f32.mrf.mxu0
    %v796 = vadd.f32 %v712, %v795
    %v797 = vpop.f32.mrf.mxu0
    %v798 = vpop.f32.mrf.mxu0
    %v799 = vpop.f32.mrf.mxu0
    %800 = vdwg.mxu0
    %v801 = vlaneseq
    %v802 = vand.u32 %v801, 127
    %vm803 = vcmp.lt.s32.totalorder %v802, 1
    %v804 = vmax.f32 %v796, 0.0
    %vm805 = vcmp.ne.f32.partialorder %v796, %v796
    %v806 = vadd.f32 %v796, 0.0
    %v807 = vand.u32 2147483647, %v796
    %v808 = vsub.f32 0.0, %v807
    %v809 = vmul.f32 %v808, 1.442695
    %v810 = vpow.pop %v809
    %v811 = vadd.f32 %v810, 1.0
    %v812 = vlog2.pop %v811
    %v813 = vmul.f32 %v812, 0.6931472
    %v814 = vmul.f32 -0.5, %v810
    %v815 = vadd.f32 %v814, 1.0
    %v816 = vmul.f32 %v815, %v810
    %v817 = vand.u32 2147483647, %v810
    %vm818 = vcmp.lt.f32.partialorder %v817, 0.0004427343
    %v819 = vsel %vm818, %v816, %v813
    %v820 = vadd.f32 %v804, %v819
    %v821 = vsel %vm805, %v806, %v820
    %v822 = vadd.f32 %v821, 0.0001
    %v823 = vsel %vm803, %v796, %v822
    %vm824 = vcmp.lt.s32.totalorder %v802, 64
    %v825 = vsel %vm824, %v420, %v443
    %826 = vst [vmem:[%s3] sm:$0xff] %v823
    %827 = vst [vmem:[%s3 + $0x8] sm:$0x1] %v825
    // Predicated region
    $region18: #{neural_process_forward.1} parent=1 // pred_check
      _
    $region19: #{neural_process_forward.1} parent=1 // pred_check_branch
      %829 = sbr.rel (0) target = $region21
    $region20: #{neural_process_forward.1} parent=1 // pred_region
      _
    $region21: #{neural_process_forward.1} parent=1 // pred_fallthru
      _
    // Predicated region
    $region22: #{neural_process_forward.1} parent=1 // pred_check
      _
    $region23: #{neural_process_forward.1} parent=1 // pred_check_branch
      %831 = sbr.rel (0) target = $region25
    $region24: #{neural_process_forward.1} parent=1 // pred_region
      _
    $region25: #{neural_process_forward.1} parent=1 // pred_fallthru
      _
    %832 = vsyncpa [#allocation3], 1

</llo_original>
